<compile_context>
chip_gen: v6e
topology: v6e:2x2x1
jax: 0.10.0
libtpu: 0.0.40
codegen_flags: <defaults>
</compile_context>

<pallas_src>
import functools

import jax
import jax.numpy as jnp
from jax import lax
from jax.experimental import pallas as pl
from jax.experimental.pallas import tpu as pltpu


def _cdiv(a, b):
    return (a + b - 1) // b


def _round_up(x, m):
    return _cdiv(x, m) * m


# --------------------------------------------------------------------------
# Kernel: one batch tile, fused encoder + tied-weight decoder (4 matmuls).
# --------------------------------------------------------------------------
def _ae_kernel(x_ref, w1_ref, w3_ref, b1_ref, b3_ref, db1_ref, db3_ref,
               xrec_ref, z_ref):
    # Shapes (padded):
    #   x_ref    [TB, in_p]      w1_ref [hid_p, in_p]    w3_ref [lat_p, hid_p]
    #   b1/db1   [1, hid_p]      b3 [1, lat_p]           db3 [1, in_p]
    #   xrec_ref [TB, in_p]      z_ref [TB, lat_p]
    cdt = x_ref.dtype
    x = x_ref[...]
    w1 = w1_ref[...]
    w3 = w3_ref[...]

    # A @ B.T: contract the LAST dims of both operands (same MXU pattern as
    # flash-attention QK^T) so only one weight orientation lives in VMEM.
    tdims = (((1,), (1,)), ((), ()))

    # ---- encoder ----
    h = lax.dot_general(x, w1, tdims, preferred_element_type=jnp.float32)
    h = jnp.maximum(h + b1_ref[...], 0.0)
    z = lax.dot_general(h.astype(cdt), w3, tdims,
                        preferred_element_type=jnp.float32)
    z = jnp.maximum(z + b3_ref[...], 0.0)
    z_ref[...] = z.astype(z_ref.dtype)

    # ---- decoder (tied weights used untransposed) ----
    hd = jnp.dot(z.astype(cdt), w3, preferred_element_type=jnp.float32)
    hd = jnp.maximum(hd + db1_ref[...], 0.0)
    logits = jnp.dot(hd.astype(cdt), w1, preferred_element_type=jnp.float32)
    xrec_ref[...] = jax.nn.sigmoid(logits + db3_ref[...]).astype(xrec_ref.dtype)


# --------------------------------------------------------------------------
# One-time host-side parameter prep (pad + cast).  Do NOT call per forward.
# --------------------------------------------------------------------------
def prepare_params(w1, b1, w3, b3, db1, db3, *, compute_dtype=jnp.bfloat16):
    hidden_dim, input_dim = w1.shape
    latent_dim = w3.shape[0]
    in_p = _round_up(input_dim, 128)
    hid_p = _round_up(hidden_dim, 128)
    lat_p = _round_up(latent_dim, 128)
    cdt = jnp.dtype(compute_dtype)

    w1_p = jnp.pad(w1, ((0, hid_p - hidden_dim), (0, in_p - input_dim))).astype(cdt)
    w3_p = jnp.pad(w3, ((0, lat_p - latent_dim), (0, hid_p - hidden_dim))).astype(cdt)
    # Biases stay f32 (added to the f32 accumulators).
    b1_p = jnp.pad(b1, (0, hid_p - hidden_dim)).reshape(1, hid_p).astype(jnp.float32)
    b3_p = jnp.pad(b3, (0, lat_p - latent_dim)).reshape(1, lat_p).astype(jnp.float32)
    db1_p = jnp.pad(db1, (0, hid_p - hidden_dim)).reshape(1, hid_p).astype(jnp.float32)
    db3_p = jnp.pad(db3, (0, in_p - input_dim)).reshape(1, in_p).astype(jnp.float32)

    return {
        "w1": w1_p, "w3": w3_p,
        "b1": b1_p, "b3": b3_p, "db1": db1_p, "db3": db3_p,
        "dims": (input_dim, hidden_dim, latent_dim),
    }


def _vmem_budget_bytes():
    """Per-generation scoped-VMEM budget: capacity minus ~16 MiB headroom."""
    try:
        capacity = int(pltpu.get_tpu_info().vmem_capacity_bytes)
    except Exception:                       # conservative fallback (v7x-sized)
        capacity = 64 * 1024 * 1024
    return max(capacity - 16 * 1024 * 1024, 32 * 1024 * 1024)


# --------------------------------------------------------------------------
# Jitted implementation (static tiling / limits decided by the wrapper).
# --------------------------------------------------------------------------
@functools.partial(
    jax.jit,
    static_argnames=("block_b", "vmem_limit", "input_dim", "latent_dim",
                     "out_dtype"))
def _forward_impl(x, w1_p, w3_p, b1_p, b3_p, db1_p, db3_p, *,
                  block_b, vmem_limit, input_dim, latent_dim, out_dtype):
    B = x.shape[0]
    hid_p, in_p = w1_p.shape
    lat_p = w3_p.shape[0]
    cdt = w1_p.dtype
    odt = jnp.dtype(out_dtype)

    B_p = _round_up(B, block_b)
    grid = (B_p // block_b,)

    # Only the activations are padded per call; weights were prepped once.
    x_p = jnp.pad(x, ((0, B_p - B), (0, in_p - input_dim))).astype(cdt)

    ws = cdt.itemsize
    ows = odt.itemsize
    cost = pl.CostEstimate(
        flops=int(4 * B_p * (in_p * hid_p + hid_p * lat_p)),
        transcendentals=int(B_p * in_p),                       # sigmoid
        bytes_accessed=int(B_p * in_p * ws
                           + (hid_p * in_p + lat_p * hid_p) * ws
                           + (2 * hid_p + lat_p + in_p) * 4
                           + B_p * (in_p + lat_p) * ows),
    )

    inv = lambda i: (0, 0)          # loop-invariant weight / bias blocks
    single = pl.Buffered(1)         # fetched once -> single-buffer them

    xrec_p, z_p = pl.pallas_call(
        _ae_kernel,
        out_shape=(
            jax.ShapeDtypeStruct((B_p, in_p), odt),
            jax.ShapeDtypeStruct((B_p, lat_p), odt),
        ),
        grid_spec=pltpu.PrefetchScalarGridSpec(
            num_scalar_prefetch=0,
            grid=grid,
            in_specs=[
                pl.BlockSpec((block_b, in_p), lambda i: (i, 0)),          # x tile
                pl.BlockSpec((hid_p, in_p), inv, pipeline_mode=single),   # W1
                pl.BlockSpec((lat_p, hid_p), inv, pipeline_mode=single),  # W3
                pl.BlockSpec((1, hid_p), inv, pipeline_mode=single),      # b1
                pl.BlockSpec((1, lat_p), inv, pipeline_mode=single),      # b3
                pl.BlockSpec((1, hid_p), inv, pipeline_mode=single),      # decoder_bias1
                pl.BlockSpec((1, in_p), inv, pipeline_mode=single),       # decoder_bias3
            ],
            out_specs=[
                pl.BlockSpec((block_b, in_p), lambda i: (i, 0)),          # x_recon
                pl.BlockSpec((block_b, lat_p), lambda i: (i, 0)),         # z
            ],
        ),
        compiler_params=pltpu.CompilerParams(
            dimension_semantics=("parallel",),
            vmem_limit_bytes=vmem_limit,
        ),
        cost_estimate=cost,
    )(x_p, w1_p, w3_p, b1_p, b3_p, db1_p, db3_p)

    return xrec_p[:B, :input_dim], z_p[:B, :latent_dim]


# --------------------------------------------------------------------------
# Public forward: picks block_b / vmem_limit per generation, then calls jit.
# --------------------------------------------------------------------------
def tied_weights_ae_forward(x, params, *, block_b=None, out_dtype=jnp.float32):
    B, input_dim = x.shape
    p_in, _, latent_dim = params["dims"]
    assert input_dim == p_in, "input_dim mismatch with prepared params"

    cdt = params["w1"].dtype
    hid_p, in_p = params["w1"].shape
    lat_p = params["w3"].shape[0]
    ws = cdt.itemsize
    ows = jnp.dtype(out_dtype).itemsize
    row_g = 16 if cdt == jnp.bfloat16 else 8     # full sublane packing / vreg

    if block_b is None:
        block_b = min(512, _round_up(B, row_g))
        # For large batches keep >=2 grid steps so both v7x TensorCores get
        # work (dimension_semantics=("parallel",)); extra step is negligible
        # on single-TC v5e / v6e.
        if B > 128:
            block_b = min(block_b, _round_up(_cdiv(B, 2), row_g))
    block_b = max(_round_up(int(block_b), row_g), row_g)

    # VMEM estimate: single-buffered resident weights + biases, double-
    # buffered streaming x / xrec / z tiles.  Shrink block_b instead of
    # clamping the limit below what the kernel actually needs.
    budget = _vmem_budget_bytes()
    weight_bytes = (hid_p * in_p + lat_p * hid_p) * ws
    bias_bytes = (2 * hid_p + lat_p + in_p) * 4

    def _needed(tb):
        tile_bytes = tb * (in_p * ws + in_p * ows + lat_p * ows)
        return weight_bytes + bias_bytes + 2 * tile_bytes + (4 << 20)

    while _needed(block_b) > budget and block_b > row_g:
        block_b = max(_round_up(block_b // 2, row_g), row_g)

    vmem_limit = int(min(budget, max(int(1.25 * _needed(block_b)), 32 << 20)))

    xrec, z = _forward_impl(
        x, params["w1"], params["w3"], params["b1"], params["b3"],
        params["db1"], params["db3"],
        block_b=int(block_b), vmem_limit=vmem_limit,
        input_dim=int(input_dim), latent_dim=int(latent_dim),
        out_dtype=jnp.dtype(out_dtype).name)
    # PyTorch forward returns (x_recon, z, z)
    return xrec, z, z


# --------------------------------------------------------------------------
# Reference + synthetic params
# --------------------------------------------------------------------------
def init_params(key, input_dim, hidden_dim, latent_dim):
    """Deterministic synthetic parameters matching nn.Linear shapes."""
    k1, k2, k3, k4 = jax.random.split(key, 4)
    w1 = jax.random.normal(k1, (hidden_dim, input_dim), jnp.float32) * 0.05
    b1 = jax.random.normal(k2, (hidden_dim,), jnp.float32) * 0.01
    w3 = jax.random.normal(k3, (latent_dim, hidden_dim), jnp.float32) * 0.05
    b3 = jax.random.normal(k4, (latent_dim,), jnp.float32) * 0.01
    db1 = jnp.zeros((hidden_dim,), jnp.float32)   # decoder biases start at 0
    db3 = jnp.zeros((input_dim,), jnp.float32)
    return w1, b1, w3, b3, db1, db3


def reference_forward(x, w1, b1, w3, b3, db1, db3):
    h = jax.nn.relu(x @ w1.T + b1)
    z = jax.nn.relu(h @ w3.T + b3)
    hd = jax.nn.relu(z @ w3 + db1)
    xr = jax.nn.sigmoid(hd @ w1 + db3)
    return xr, z, z


if __name__ == "__main__":
    B, INPUT_DIM, HIDDEN_DIM, LATENT_DIM = 16, 32, 64, 16

    key = jax.random.PRNGKey(0)
    kx, kp = jax.random.split(key)
    x = jax.random.normal(kx, (B, INPUT_DIM), jnp.float32)
    raw = init_params(kp, INPUT_DIM, HIDDEN_DIM, LATENT_DIM)
    xrec_ref, z_ref, _ = reference_forward(x, *raw)

    # f32 operand path (opt-in): matches the pure-JAX reference tightly.
    prep32 = prepare_params(*raw, compute_dtype=jnp.float32)
    xrec, z, z2 = tied_weights_ae_forward(x, prep32)
    jax.block_until_ready((xrec, z, z2))
    assert xrec.shape == (B, INPUT_DIM) and z.shape == (B, LATENT_DIM)
    assert jnp.allclose(xrec, xrec_ref, atol=1e-5, rtol=1e-5)
    assert jnp.allclose(z, z_ref, atol=1e-5, rtol=1e-5)

    # bf16 operand path (default): f32 accumulation, looser tolerance.
    prep16 = prepare_params(*raw)
    xrec16, z16, _ = tied_weights_ae_forward(x, prep16)
    jax.block_until_ready((xrec16, z16))
    assert jnp.allclose(xrec16, xrec_ref, atol=5e-2)
    assert jnp.allclose(z16, z_ref, atol=5e-2)

    print("KERNEL_OK")
</pallas_src>

<mosaic_0001>
module attributes {stable_mosaic.version = 11 : i64} {
  func.func @_ae_kernel(%arg0: i32, %arg1: memref<16x128xf32, #tpu.memory_space<vmem>>, %arg2: memref<128x128xf32, #tpu.memory_space<vmem>>, %arg3: memref<128x128xf32, #tpu.memory_space<vmem>>, %arg4: memref<1x128xf32, #tpu.memory_space<vmem>>, %arg5: memref<1x128xf32, #tpu.memory_space<vmem>>, %arg6: memref<1x128xf32, #tpu.memory_space<vmem>>, %arg7: memref<1x128xf32, #tpu.memory_space<vmem>>, %arg8: memref<16x128xf32, #tpu.memory_space<vmem>>, %arg9: memref<16x128xf32, #tpu.memory_space<vmem>>) attributes {dimension_semantics = [#tpu.dimension_semantics<parallel>], iteration_bounds = array<i64: 1>, scalar_prefetch = 0 : i64, scratch_operands = 0 : i64, tpu.core_type = #tpu.core_type<tc>, window_params = [{transform_indices = @transform_0, window_bounds = array<i64: 16, 128>}, {pipeline_mode = #tpu.pipeline_mode<synchronous>, transform_indices = @transform_1, window_bounds = array<i64: 128, 128>}, {pipeline_mode = #tpu.pipeline_mode<synchronous>, transform_indices = @transform_2, window_bounds = array<i64: 128, 128>}, {pipeline_mode = #tpu.pipeline_mode<synchronous>, transform_indices = @transform_3, window_bounds = array<i64: 1, 128>}, {pipeline_mode = #tpu.pipeline_mode<synchronous>, transform_indices = @transform_4, window_bounds = array<i64: 1, 128>}, {pipeline_mode = #tpu.pipeline_mode<synchronous>, transform_indices = @transform_5, window_bounds = array<i64: 1, 128>}, {pipeline_mode = #tpu.pipeline_mode<synchronous>, transform_indices = @transform_6, window_bounds = array<i64: 1, 128>}, {transform_indices = @transform_7, window_bounds = array<i64: 16, 128>}, {transform_indices = @transform_8, window_bounds = array<i64: 16, 128>}]} {
    %c0 = arith.constant 0 : index
    %c0_0 = arith.constant 0 : index
    %0 = vector.load %arg1[%c0, %c0_0] : memref<16x128xf32, #tpu.memory_space<vmem>>, vector<16x128xf32>
    %c0_1 = arith.constant 0 : index
    %c0_2 = arith.constant 0 : index
    %1 = vector.load %arg2[%c0_1, %c0_2] : memref<128x128xf32, #tpu.memory_space<vmem>>, vector<128x128xf32>
    %c0_3 = arith.constant 0 : index
    %c0_4 = arith.constant 0 : index
    %2 = vector.load %arg3[%c0_3, %c0_4] : memref<128x128xf32, #tpu.memory_space<vmem>>, vector<128x128xf32>
    %cst = arith.constant dense<0.000000e+00> : vector<16x128xf32>
    %3 = tpu.matmul %0, %1, %cst {dimension_numbers = #tpu.dot_dimension_numbers<[1], [1], [0], [0], [0, 0, 1, 0], [], []>} : vector<16x128xf32>, vector<128x128xf32>, vector<16x128xf32> -> vector<16x128xf32>
    %c0_5 = arith.constant 0 : index
    %c0_6 = arith.constant 0 : index
    %4 = vector.load %arg4[%c0_5, %c0_6] : memref<1x128xf32, #tpu.memory_space<vmem>>, vector<1x128xf32>
    %5 = vector.broadcast %4 : vector<1x128xf32> to vector<16x128xf32>
    %6 = arith.addf %3, %5 : vector<16x128xf32>
    %cst_7 = arith.constant 0.000000e+00 : f32
    %7 = vector.broadcast %cst_7 : f32 to vector<16x128xf32>
    %8 = arith.maximumf %6, %7 : vector<16x128xf32>
    %cst_8 = arith.constant dense<0.000000e+00> : vector<16x128xf32>
    %9 = tpu.matmul %8, %2, %cst_8 {dimension_numbers = #tpu.dot_dimension_numbers<[1], [1], [0], [0], [0, 0, 1, 0], [], []>} : vector<16x128xf32>, vector<128x128xf32>, vector<16x128xf32> -> vector<16x128xf32>
    %c0_9 = arith.constant 0 : index
    %c0_10 = arith.constant 0 : index
    %10 = vector.load %arg5[%c0_9, %c0_10] : memref<1x128xf32, #tpu.memory_space<vmem>>, vector<1x128xf32>
    %11 = vector.broadcast %10 : vector<1x128xf32> to vector<16x128xf32>
    %12 = arith.addf %9, %11 : vector<16x128xf32>
    %cst_11 = arith.constant 0.000000e+00 : f32
    %13 = vector.broadcast %cst_11 : f32 to vector<16x128xf32>
    %14 = arith.maximumf %12, %13 : vector<16x128xf32>
    %c0_12 = arith.constant 0 : index
    %c0_13 = arith.constant 0 : index
    %15 = vector.load %arg9[%c0_12, %c0_13] : memref<16x128xf32, #tpu.memory_space<vmem>>, vector<16x128xf32>
    tpu.vector_store %arg9[%c0_12, %c0_13], %14 {strides = array<i32>} : memref<16x128xf32, #tpu.memory_space<vmem>>, vector<16x128xf32>,
    %cst_14 = arith.constant dense<0.000000e+00> : vector<16x128xf32>
    %16 = tpu.matmul %14, %2, %cst_14 {dimension_numbers = #tpu.dot_dimension_numbers<[1], [0], [0], [1], [0, 0, 1, 1], [], []>} : vector<16x128xf32>, vector<128x128xf32>, vector<16x128xf32> -> vector<16x128xf32>
    %c0_15 = arith.constant 0 : index
    %c0_16 = arith.constant 0 : index
    %17 = vector.load %arg6[%c0_15, %c0_16] : memref<1x128xf32, #tpu.memory_space<vmem>>, vector<1x128xf32>
    %18 = vector.broadcast %17 : vector<1x128xf32> to vector<16x128xf32>
    %19 = arith.addf %16, %18 : vector<16x128xf32>
    %cst_17 = arith.constant 0.000000e+00 : f32
    %20 = vector.broadcast %cst_17 : f32 to vector<16x128xf32>
    %21 = arith.maximumf %19, %20 : vector<16x128xf32>
    %cst_18 = arith.constant dense<0.000000e+00> : vector<16x128xf32>
    %22 = tpu.matmul %21, %1, %cst_18 {dimension_numbers = #tpu.dot_dimension_numbers<[1], [0], [0], [1], [0, 0, 1, 1], [], []>} : vector<16x128xf32>, vector<128x128xf32>, vector<16x128xf32> -> vector<16x128xf32>
    %c0_19 = arith.constant 0 : index
    %c0_20 = arith.constant 0 : index
    %23 = vector.load %arg7[%c0_19, %c0_20] : memref<1x128xf32, #tpu.memory_space<vmem>>, vector<1x128xf32>
    %24 = vector.broadcast %23 : vector<1x128xf32> to vector<16x128xf32>
    %25 = arith.addf %22, %24 : vector<16x128xf32>
    %26 = arith.negf %25 : vector<16x128xf32>
    %27 = math.exp %26 : vector<16x128xf32>
    %cst_21 = arith.constant 1.000000e+00 : f32
    %28 = vector.broadcast %cst_21 : f32 to vector<16x128xf32>
    %29 = arith.addf %28, %27 : vector<16x128xf32>
    %30 = arith.divf %28, %29 : vector<16x128xf32>
    %c0_22 = arith.constant 0 : index
    %c0_23 = arith.constant 0 : index
    %31 = vector.load %arg8[%c0_22, %c0_23] : memref<16x128xf32, #tpu.memory_space<vmem>>, vector<16x128xf32>
    tpu.vector_store %arg8[%c0_22, %c0_23], %30 {strides = array<i32>} : memref<16x128xf32, #tpu.memory_space<vmem>>, vector<16x128xf32>,
    return
  }
  func.func @transform_0(%arg0: i32) -> (i32, i32) {
    %c0_i32 = arith.constant 0 : i32
    %c0_i32_0 = arith.constant 0 : i32
    return %arg0, %c0_i32 : i32, i32
  }
  func.func @transform_1(%arg0: i32) -> (i32, i32) {
    %c0_i32 = arith.constant 0 : i32
    %c0_i32_0 = arith.constant 0 : i32
    %c0_i32_1 = arith.constant 0 : i32
    return %c0_i32, %c0_i32_0 : i32, i32
  }
  func.func @transform_2(%arg0: i32) -> (i32, i32) {
    %c0_i32 = arith.constant 0 : i32
    %c0_i32_0 = arith.constant 0 : i32
    %c0_i32_1 = arith.constant 0 : i32
    return %c0_i32, %c0_i32_0 : i32, i32
  }
  func.func @transform_3(%arg0: i32) -> (i32, i32) {
    %c0_i32 = arith.constant 0 : i32
    %c0_i32_0 = arith.constant 0 : i32
    %c0_i32_1 = arith.constant 0 : i32
    return %c0_i32, %c0_i32_0 : i32, i32
  }
  func.func @transform_4(%arg0: i32) -> (i32, i32) {
    %c0_i32 = arith.constant 0 : i32
    %c0_i32_0 = arith.constant 0 : i32
    %c0_i32_1 = arith.constant 0 : i32
    return %c0_i32, %c0_i32_0 : i32, i32
  }
  func.func @transform_5(%arg0: i32) -> (i32, i32) {
    %c0_i32 = arith.constant 0 : i32
    %c0_i32_0 = arith.constant 0 : i32
    %c0_i32_1 = arith.constant 0 : i32
    return %c0_i32, %c0_i32_0 : i32, i32
  }
  func.func @transform_6(%arg0: i32) -> (i32, i32) {
    %c0_i32 = arith.constant 0 : i32
    %c0_i32_0 = arith.constant 0 : i32
    %c0_i32_1 = arith.constant 0 : i32
    return %c0_i32, %c0_i32_0 : i32, i32
  }
  func.func @transform_7(%arg0: i32) -> (i32, i32) {
    %c0_i32 = arith.constant 0 : i32
    %c0_i32_0 = arith.constant 0 : i32
    return %arg0, %c0_i32 : i32, i32
  }
  func.func @transform_8(%arg0: i32) -> (i32, i32) {
    %c0_i32 = arith.constant 0 : i32
    %c0_i32_0 = arith.constant 0 : i32
    return %arg0, %c0_i32 : i32, i32
  }
}

</mosaic_0001>

<llo_original>
// kernel: _forward_impl.1
$region0: #{_forward_impl.1}
  #allocation0 [shape = 'u32[]', space=smem, size = 0x4, offset = 0x4, fixed_abs, tag = 'smem constant byte address 0x4 - core index']
  #allocation1 [shape = 'u32[144,128]{1,0:T(1,128)}', space=vmem, size = 0x12000, scoped, tag = 'internal scratch']
  %s0 = inlined_call_operand.vmem [shape: f32[16,128], index: 0, kind: input, shape index: {}]
  %s1 = inlined_call_operand.hbm [shape: f32[128,128], index: 1, kind: input, shape index: {}]
  %s2 = inlined_call_operand.hbm [shape: f32[128,128], index: 2, kind: input, shape index: {}]
  %s3 = inlined_call_operand.vmem [shape: f32[1,128], index: 3, kind: input, shape index: {}]
  %s4 = inlined_call_operand.vmem [shape: f32[1,128], index: 4, kind: input, shape index: {}]
  %s5 = inlined_call_operand.vmem [shape: f32[1,128], index: 5, kind: input, shape index: {}]
  %s6 = inlined_call_operand.vmem [shape: f32[1,128], index: 6, kind: input, shape index: {}]
  %s7 = inlined_call_operand.hbm [shape: f32[16,128], index: 7, kind: output, shape index: {0}]
  %s8 = inlined_call_operand.hbm [shape: f32[16,128], index: 8, kind: output, shape index: {1}]
  %9 = xla_tuple %s7, %s8
  %s10 = sld [smem:[#allocation0]]
  $region54: #{_forward_impl.1} parent=0
    _
  %s12 = ssub.s32 1, %s10
  %s13 = scalar_select 0, %s12, %s10
  $region1: #{_forward_impl.1} parent=0
    #allocation2 [shape = 'u8[65536]{0}', space=vmem, size = 0x10000, scoped, tag = 'input window, operand 1, single buffered']
    #allocation3 [shape = 's32[1]{0}', space=sflag, size = 0x4, scoped, tag = 'scoped memory for _forward_impl.1']
    #allocation4 [shape = 's32[1]{0}', space=sflag, size = 0x4, scoped, tag = 'scoped memory for _forward_impl.1']
    #allocation5 [shape = 'u8[65536]{0}', space=vmem, size = 0x10000, scoped, tag = 'input window, operand 2, single buffered']
    #allocation6 [shape = 's32[1]{0}', space=sflag, size = 0x4, scoped, tag = 'scoped memory for _forward_impl.1']
    #allocation7 [shape = 'u8[8192]{0}', space=vmem, size = 0x2000, scoped, tag = 'output window, operand 0, single buffered']
    #allocation8 [shape = 'u8[8192]{0}', space=vmem, size = 0x2000, scoped, tag = 'output window, operand 1, single buffered']
    #allocation9 [shape = 's32[1]{0}', space=sflag, size = 0x4, scoped, tag = 'scoped memory for _forward_impl.1']
    %14 = vsyncpa [#allocation3], 0
    %15 = vsyncpa [#allocation6], 0
    %16 = vsyncpa [#allocation4], 0
    %17 = vsyncpa [#allocation9], 0
    // Predicated region
    $region2: #{_forward_impl.1} parent=1 // pred_check
      _
    $region3: #{_forward_impl.1} parent=1 // pred_check_branch
      %19 = sbr.rel (0) target = $region5
    $region4: #{_forward_impl.1} parent=1 // pred_region
      _
    $region5: #{_forward_impl.1} parent=1 // pred_fallthru
      _
    // Predicated region
    $region6: #{_forward_impl.1} parent=1 // pred_check
      _
    $region7: #{_forward_impl.1} parent=1 // pred_check_branch
      %21 = sbr.rel (0) target = $region9
    $region8: #{_forward_impl.1} parent=1 // pred_region
      %s23 = ssub.s32 2048, 2048
      %24 = vsyncadd [#allocation3], %s23
      %s25 = sshll.u32 [#allocation2], 4
      %s26 = int_to_ptr.vmem [resolvable:$true] %s25
      %31 = dma.hbm_to_vmem [thread:$0]  %s1, 2048, %s26, [#allocation3], 128, 128, 8
    $region9: #{_forward_impl.1} parent=1 // pred_fallthru
      _
    // Predicated region
    $region10: #{_forward_impl.1} parent=1 // pred_check
      _
    $region11: #{_forward_impl.1} parent=1 // pred_check_branch
      %33 = sbr.rel (0) target = $region13
    $region12: #{_forward_impl.1} parent=1 // pred_region
      %s35 = ssub.s32 2048, 2048
      %36 = vsyncadd [#allocation6], %s35
      %s37 = sshll.u32 [#allocation5], 4
      %s38 = int_to_ptr.vmem [resolvable:$true] %s37
      %43 = dma.hbm_to_vmem [thread:$0]  %s2, 2048, %s38, [#allocation6], 128, 128, 8
    $region13: #{_forward_impl.1} parent=1 // pred_fallthru
      _
    // Predicated region
    $region14: #{_forward_impl.1} parent=1 // pred_check
      _
    $region15: #{_forward_impl.1} parent=1 // pred_check_branch
      %45 = sbr.rel (0) target = $region17
    $region16: #{_forward_impl.1} parent=1 // pred_region
      _
    $region17: #{_forward_impl.1} parent=1 // pred_fallthru
      _
    // Predicated region
    $region18: #{_forward_impl.1} parent=1 // pred_check
      _
    $region19: #{_forward_impl.1} parent=1 // pred_check_branch
      %47 = sbr.rel (0) target = $region21
    $region20: #{_forward_impl.1} parent=1 // pred_region
      _
    $region21: #{_forward_impl.1} parent=1 // pred_fallthru
      _
    // Predicated region
    $region22: #{_forward_impl.1} parent=1 // pred_check
      _
    $region23: #{_forward_impl.1} parent=1 // pred_check_branch
      %49 = sbr.rel (0) target = $region25
    $region24: #{_forward_impl.1} parent=1 // pred_region
      _
    $region25: #{_forward_impl.1} parent=1 // pred_fallthru
      _
    // Predicated region
    $region26: #{_forward_impl.1} parent=1 // pred_check
      _
    $region27: #{_forward_impl.1} parent=1 // pred_check_branch
      %51 = sbr.rel (0) target = $region29
    $region28: #{_forward_impl.1} parent=1 // pred_region
      _
    $region29: #{_forward_impl.1} parent=1 // pred_fallthru
      _
    // Predicated region
    $region30: #{_forward_impl.1} parent=1 // pred_check
      _
    $region31: #{_forward_impl.1} parent=1 // pred_check_branch
      %53 = sbr.rel (0) target = $region33
    $region32: #{_forward_impl.1} parent=1 // pred_region
      %54 = dma.done [#allocation3], 2048
    $region33: #{_forward_impl.1} parent=1 // pred_fallthru
      _
    // Predicated region
    $region34: #{_forward_impl.1} parent=1 // pred_check
      _
    $region35: #{_forward_impl.1} parent=1 // pred_check_branch
      %56 = sbr.rel (0) target = $region37
    $region36: #{_forward_impl.1} parent=1 // pred_region
      %57 = dma.done [#allocation6], 2048
    $region37: #{_forward_impl.1} parent=1 // pred_fallthru
      _
    %v58 = vld [vmem:[%s0] sm:$0xff]
    %v59 = vld [vmem:[%s0 + $0x8] sm:$0xff]
    %v60 = vld [vmem:[#allocation2] sm:$0xff]
    %v61 = vld [vmem:[#allocation2 + $0x8] sm:$0xff]
    %v62 = vld [vmem:[#allocation2 + $0x10] sm:$0xff]
    %v63 = vld [vmem:[#allocation2 + $0x18] sm:$0xff]
    %v64 = vld [vmem:[#allocation2 + $0x20] sm:$0xff]
    %v65 = vld [vmem:[#allocation2 + $0x28] sm:$0xff]
    %v66 = vld [vmem:[#allocation2 + $0x30] sm:$0xff]
    %v67 = vld [vmem:[#allocation2 + $0x38] sm:$0xff]
    %v68 = vld [vmem:[#allocation2 + $0x40] sm:$0xff]
    %v69 = vld [vmem:[#allocation2 + $0x48] sm:$0xff]
    %v70 = vld [vmem:[#allocation2 + $0x50] sm:$0xff]
    %v71 = vld [vmem:[#allocation2 + $0x58] sm:$0xff]
    %v72 = vld [vmem:[#allocation2 + $0x60] sm:$0xff]
    %v73 = vld [vmem:[#allocation2 + $0x68] sm:$0xff]
    %v74 = vld [vmem:[#allocation2 + $0x70] sm:$0xff]
    %v75 = vld [vmem:[#allocation2 + $0x78] sm:$0xff]
    %v76 = vld [vmem:[#allocation5] sm:$0xff]
    %v77 = vld [vmem:[#allocation5 + $0x8] sm:$0xff]
    %v78 = vld [vmem:[#allocation5 + $0x10] sm:$0xff]
    %v79 = vld [vmem:[#allocation5 + $0x18] sm:$0xff]
    %v80 = vld [vmem:[#allocation5 + $0x20] sm:$0xff]
    %v81 = vld [vmem:[#allocation5 + $0x28] sm:$0xff]
    %v82 = vld [vmem:[#allocation5 + $0x30] sm:$0xff]
    %v83 = vld [vmem:[#allocation5 + $0x38] sm:$0xff]
    %v84 = vld [vmem:[#allocation5 + $0x40] sm:$0xff]
    %v85 = vld [vmem:[#allocation5 + $0x48] sm:$0xff]
    %v86 = vld [vmem:[#allocation5 + $0x50] sm:$0xff]
    %v87 = vld [vmem:[#allocation5 + $0x58] sm:$0xff]
    %v88 = vld [vmem:[#allocation5 + $0x60] sm:$0xff]
    %v89 = vld [vmem:[#allocation5 + $0x68] sm:$0xff]
    %v90 = vld [vmem:[#allocation5 + $0x70] sm:$0xff]
    %v91 = vld [vmem:[#allocation5 + $0x78] sm:$0xff]
    %v92 = vld [vmem:[%s3] sm:$0x1]
    %v94 = vlaneseq
    %v95 = vshrl.u32 %v94, 7
    %v96 = vsub.s32 0, %v95
    %v97 = vrot.slane %v92, %v96
    %99 = vmatprep.subr.mxu0 0.0
    %100 = vmatpush1.xpose.msra.mxu0 %v75
    %101 = vmatprep.subr.mxu0 0.0
    %102 = vmatpush1.xpose.msra.mxu0 %v74
    %103 = vmatprep.subr.mxu0 0.0
    %104 = vmatpush1.xpose.msra.mxu0 %v73
    %105 = vmatprep.subr.mxu0 0.0
    %106 = vmatpush1.xpose.msra.mxu0 %v72
    %107 = vmatprep.subr.mxu0 0.0
    %108 = vmatpush1.xpose.msra.mxu0 %v71
    %109 = vmatprep.subr.mxu0 0.0
    %110 = vmatpush1.xpose.msra.mxu0 %v70
    %111 = vmatprep.subr.mxu0 0.0
    %112 = vmatpush1.xpose.msra.mxu0 %v69
    %113 = vmatprep.subr.mxu0 0.0
    %114 = vmatpush1.xpose.msra.mxu0 %v68
    %115 = vmatprep.subr.mxu0 0.0
    %116 = vmatpush1.xpose.msra.mxu0 %v67
    %117 = vmatprep.subr.mxu0 0.0
    %118 = vmatpush1.xpose.msra.mxu0 %v66
    %119 = vmatprep.subr.mxu0 0.0
    %120 = vmatpush1.xpose.msra.mxu0 %v65
    %121 = vmatprep.subr.mxu0 0.0
    %122 = vmatpush1.xpose.msra.mxu0 %v64
    %123 = vmatprep.subr.mxu0 0.0
    %124 = vmatpush1.xpose.msra.mxu0 %v63
    %125 = vmatprep.subr.mxu0 0.0
    %126 = vmatpush1.xpose.msra.mxu0 %v62
    %127 = vmatprep.subr.mxu0 0.0
    %128 = vmatpush1.xpose.msra.mxu0 %v61
    %129 = vmatprep.subr.mxu0 0.0
    %130 = vmatpush1.xpose.msra.mxu0 %v60
    %131 = vmatprep.subr.mxu0 0.0
    %132 = vmatpush2.xpose.msra.mxu0 0.0
    %133 = vmatprep.subr.mxu0 0.0
    %134 = vmatpush2.xpose.msra.mxu0 0.0
    %135 = vmatprep.subr.mxu0 0.0
    %136 = vmatpush2.xpose.msra.mxu0 0.0
    %137 = vmatprep.subr.mxu0 0.0
    %138 = vmatpush2.xpose.msra.mxu0 0.0
    %139 = vmatprep.subr.mxu0 0.0
    %140 = vmatpush2.xpose.msra.mxu0 0.0
    %141 = vmatprep.subr.mxu0 0.0
    %142 = vmatpush2.xpose.msra.mxu0 0.0
    %143 = vmatprep.subr.mxu0 0.0
    %144 = vmatpush2.xpose.msra.mxu0 0.0
    %145 = vmatprep.subr.mxu0 0.0
    %146 = vmatpush2.xpose.msra.mxu0 0.0
    %147 = vmatprep.subr.mxu0 0.0
    %148 = vmatpush2.xpose.msra.mxu0 0.0
    %149 = vmatprep.subr.mxu0 0.0
    %150 = vmatpush2.xpose.msra.mxu0 0.0
    %151 = vmatprep.subr.mxu0 0.0
    %152 = vmatpush2.xpose.msra.mxu0 0.0
    %153 = vmatprep.subr.mxu0 0.0
    %154 = vmatpush2.xpose.msra.mxu0 0.0
    %155 = vmatprep.subr.mxu0 0.0
    %156 = vmatpush2.xpose.msra.mxu0 0.0
    %157 = vmatprep.subr.mxu0 0.0
    %158 = vmatpush2.xpose.msra.mxu0 0.0
    %159 = vmatprep.subr.mxu0 0.0
    %160 = vmatpush2.xpose.msra.mxu0 0.0
    %161 = vmatprep.subr.mxu0 0.0
    %162 = vmatpush2.xpose.msra.mxu0 0.0
    %163 = vmatprep.mubr.f32.mxu0 0.0
    %164 = vmatmul.mubr.f32.gmra.mxu0 %v58
    %v165 = vpop.f32.mrf.mxu0
    %v166 = vadd.f32 %v97, %v165
    %v167 = vpop.f32.mrf.mxu0
    %168 = vmatprep.mubr.f32.mxu0 0.0
    %169 = vmatmul.mubr.f32.gmra.mxu0 %v59
    %v170 = vpop.f32.mrf.mxu0
    %v171 = vadd.f32 %v97, %v170
    %v172 = vpop.f32.mrf.mxu0
    %173 = vdwg.mxu0
    %v174 = vmax.f32 %v166, 0.0
    %v175 = vmax.f32 %v171, 0.0
    %v176 = vld [vmem:[%s4] sm:$0x1]
    %v178 = vlaneseq
    %v179 = vshrl.u32 %v178, 7
    %v180 = vsub.s32 0, %v179
    %v181 = vrot.slane %v176, %v180
    %183 = vmatprep.subr.mxu0 0.0
    %184 = vmatpush1.xpose.msra.mxu0 %v91
    %185 = vmatprep.subr.mxu0 0.0
    %186 = vmatpush1.xpose.msra.mxu0 %v90
    %187 = vmatprep.subr.mxu0 0.0
    %188 = vmatpush1.xpose.msra.mxu0 %v89
    %189 = vmatprep.subr.mxu0 0.0
    %190 = vmatpush1.xpose.msra.mxu0 %v88
    %191 = vmatprep.subr.mxu0 0.0
    %192 = vmatpush1.xpose.msra.mxu0 %v87
    %193 = vmatprep.subr.mxu0 0.0
    %194 = vmatpush1.xpose.msra.mxu0 %v86
    %195 = vmatprep.subr.mxu0 0.0
    %196 = vmatpush1.xpose.msra.mxu0 %v85
    %197 = vmatprep.subr.mxu0 0.0
    %198 = vmatpush1.xpose.msra.mxu0 %v84
    %199 = vmatprep.subr.mxu0 0.0
    %200 = vmatpush1.xpose.msra.mxu0 %v83
    %201 = vmatprep.subr.mxu0 0.0
    %202 = vmatpush1.xpose.msra.mxu0 %v82
    %203 = vmatprep.subr.mxu0 0.0
    %204 = vmatpush1.xpose.msra.mxu0 %v81
    %205 = vmatprep.subr.mxu0 0.0
    %206 = vmatpush1.xpose.msra.mxu0 %v80
    %207 = vmatprep.subr.mxu0 0.0
    %208 = vmatpush1.xpose.msra.mxu0 %v79
    %209 = vmatprep.subr.mxu0 0.0
    %210 = vmatpush1.xpose.msra.mxu0 %v78
    %211 = vmatprep.subr.mxu0 0.0
    %212 = vmatpush1.xpose.msra.mxu0 %v77
    %213 = vmatprep.subr.mxu0 0.0
    %214 = vmatpush1.xpose.msra.mxu0 %v76
    %215 = vmatprep.subr.mxu0 0.0
    %216 = vmatpush2.xpose.msra.mxu0 0.0
    %217 = vmatprep.subr.mxu0 0.0
    %218 = vmatpush2.xpose.msra.mxu0 0.0
    %219 = vmatprep.subr.mxu0 0.0
    %220 = vmatpush2.xpose.msra.mxu0 0.0
    %221 = vmatprep.subr.mxu0 0.0
    %222 = vmatpush2.xpose.msra.mxu0 0.0
    %223 = vmatprep.subr.mxu0 0.0
    %224 = vmatpush2.xpose.msra.mxu0 0.0
    %225 = vmatprep.subr.mxu0 0.0
    %226 = vmatpush2.xpose.msra.mxu0 0.0
    %227 = vmatprep.subr.mxu0 0.0
    %228 = vmatpush2.xpose.msra.mxu0 0.0
    %229 = vmatprep.subr.mxu0 0.0
    %230 = vmatpush2.xpose.msra.mxu0 0.0
    %231 = vmatprep.subr.mxu0 0.0
    %232 = vmatpush2.xpose.msra.mxu0 0.0
    %233 = vmatprep.subr.mxu0 0.0
    %234 = vmatpush2.xpose.msra.mxu0 0.0
    %235 = vmatprep.subr.mxu0 0.0
    %236 = vmatpush2.xpose.msra.mxu0 0.0
    %237 = vmatprep.subr.mxu0 0.0
    %238 = vmatpush2.xpose.msra.mxu0 0.0
    %239 = vmatprep.subr.mxu0 0.0
    %240 = vmatpush2.xpose.msra.mxu0 0.0
    %241 = vmatprep.subr.mxu0 0.0
    %242 = vmatpush2.xpose.msra.mxu0 0.0
    %243 = vmatprep.subr.mxu0 0.0
    %244 = vmatpush2.xpose.msra.mxu0 0.0
    %245 = vmatprep.subr.mxu0 0.0
    %246 = vmatpush2.xpose.msra.mxu0 0.0
    %247 = vmatprep.mubr.f32.mxu0 0.0
    %248 = vmatmul.mubr.f32.gmra.mxu0 %v174
    %v249 = vpop.f32.mrf.mxu0
    %v250 = vadd.f32 %v181, %v249
    %v251 = vpop.f32.mrf.mxu0
    %252 = vmatprep.mubr.f32.mxu0 0.0
    %253 = vmatmul.mubr.f32.gmra.mxu0 %v175
    %v254 = vpop.f32.mrf.mxu0
    %v255 = vadd.f32 %v181, %v254
    %v256 = vpop.f32.mrf.mxu0
    %257 = vdwg.mxu0
    %v258 = vmax.f32 %v250, 0.0
    %v259 = vmax.f32 %v255, 0.0
    %260 = vst [vmem:[#allocation8] sm:$0xff] %v258
    %261 = vst [vmem:[#allocation8 + $0x8] sm:$0xff] %v259
    %v262 = vld [vmem:[%s5] sm:$0x1]
    %v264 = vlaneseq
    %v265 = vshrl.u32 %v264, 7
    %v266 = vsub.s32 0, %v265
    %v267 = vrot.slane %v262, %v266
    %269 = vmatprep.subr.mxu0 0.0
    %270 = vmatpush1.msra.mxu0 %v91
    %271 = vmatprep.subr.mxu0 0.0
    %272 = vmatpush1.msra.mxu0 %v90
    %273 = vmatprep.subr.mxu0 0.0
    %274 = vmatpush1.msra.mxu0 %v89
    %275 = vmatprep.subr.mxu0 0.0
    %276 = vmatpush1.msra.mxu0 %v88
    %277 = vmatprep.subr.mxu0 0.0
    %278 = vmatpush1.msra.mxu0 %v87
    %279 = vmatprep.subr.mxu0 0.0
    %280 = vmatpush1.msra.mxu0 %v86
    %281 = vmatprep.subr.mxu0 0.0
    %282 = vmatpush1.msra.mxu0 %v85
    %283 = vmatprep.subr.mxu0 0.0
    %284 = vmatpush1.msra.mxu0 %v84
    %285 = vmatprep.subr.mxu0 0.0
    %286 = vmatpush1.msra.mxu0 %v83
    %287 = vmatprep.subr.mxu0 0.0
    %288 = vmatpush1.msra.mxu0 %v82
    %289 = vmatprep.subr.mxu0 0.0
    %290 = vmatpush1.msra.mxu0 %v81
    %291 = vmatprep.subr.mxu0 0.0
    %292 = vmatpush1.msra.mxu0 %v80
    %293 = vmatprep.subr.mxu0 0.0
    %294 = vmatpush1.msra.mxu0 %v79
    %295 = vmatprep.subr.mxu0 0.0
    %296 = vmatpush1.msra.mxu0 %v78
    %297 = vmatprep.subr.mxu0 0.0
    %298 = vmatpush1.msra.mxu0 %v77
    %299 = vmatprep.subr.mxu0 0.0
    %300 = vmatpush1.msra.mxu0 %v76
    %301 = vmatprep.subr.mxu0 0.0
    %302 = vmatpush2.msra.mxu0 0.0
    %303 = vmatprep.subr.mxu0 0.0
    %304 = vmatpush2.msra.mxu0 0.0
    %305 = vmatprep.subr.mxu0 0.0
    %306 = vmatpush2.msra.mxu0 0.0
    %307 = vmatprep.subr.mxu0 0.0
    %308 = vmatpush2.msra.mxu0 0.0
    %309 = vmatprep.subr.mxu0 0.0
    %310 = vmatpush2.msra.mxu0 0.0
    %311 = vmatprep.subr.mxu0 0.0
    %312 = vmatpush2.msra.mxu0 0.0
    %313 = vmatprep.subr.mxu0 0.0
    %314 = vmatpush2.msra.mxu0 0.0
    %315 = vmatprep.subr.mxu0 0.0
    %316 = vmatpush2.msra.mxu0 0.0
    %317 = vmatprep.subr.mxu0 0.0
    %318 = vmatpush2.msra.mxu0 0.0
    %319 = vmatprep.subr.mxu0 0.0
    %320 = vmatpush2.msra.mxu0 0.0
    %321 = vmatprep.subr.mxu0 0.0
    %322 = vmatpush2.msra.mxu0 0.0
    %323 = vmatprep.subr.mxu0 0.0
    %324 = vmatpush2.msra.mxu0 0.0
    %325 = vmatprep.subr.mxu0 0.0
    %326 = vmatpush2.msra.mxu0 0.0
    %327 = vmatprep.subr.mxu0 0.0
    %328 = vmatpush2.msra.mxu0 0.0
    %329 = vmatprep.subr.mxu0 0.0
    %330 = vmatpush2.msra.mxu0 0.0
    %331 = vmatprep.subr.mxu0 0.0
    %332 = vmatpush2.msra.mxu0 0.0
    %333 = vmatprep.mubr.f32.mxu0 0.0
    %334 = vmatmul.mubr.f32.gmra.mxu0 %v258
    %v335 = vpop.f32.mrf.mxu0
    %v336 = vadd.f32 %v267, %v335
    %v337 = vpop.f32.mrf.mxu0
    %338 = vmatprep.mubr.f32.mxu0 0.0
    %339 = vmatmul.mubr.f32.gmra.mxu0 %v259
    %v340 = vpop.f32.mrf.mxu0
    %v341 = vadd.f32 %v267, %v340
    %v342 = vpop.f32.mrf.mxu0
    %343 = vdwg.mxu0
    %v344 = vmax.f32 %v336, 0.0
    %v345 = vmax.f32 %v341, 0.0
    %v346 = vld [vmem:[%s6] sm:$0x1]
    %v348 = vlaneseq
    %v349 = vshrl.u32 %v348, 7
    %v350 = vsub.s32 0, %v349
    %v351 = vrot.slane %v346, %v350
    %353 = vmatprep.subr.mxu0 0.0
    %354 = vmatpush1.msra.mxu0 %v75
    %355 = vmatprep.subr.mxu0 0.0
    %356 = vmatpush1.msra.mxu0 %v74
    %357 = vmatprep.subr.mxu0 0.0
    %358 = vmatpush1.msra.mxu0 %v73
    %359 = vmatprep.subr.mxu0 0.0
    %360 = vmatpush1.msra.mxu0 %v72
    %361 = vmatprep.subr.mxu0 0.0
    %362 = vmatpush1.msra.mxu0 %v71
    %363 = vmatprep.subr.mxu0 0.0
    %364 = vmatpush1.msra.mxu0 %v70
    %365 = vmatprep.subr.mxu0 0.0
    %366 = vmatpush1.msra.mxu0 %v69
    %367 = vmatprep.subr.mxu0 0.0
    %368 = vmatpush1.msra.mxu0 %v68
    %369 = vmatprep.subr.mxu0 0.0
    %370 = vmatpush1.msra.mxu0 %v67
    %371 = vmatprep.subr.mxu0 0.0
    %372 = vmatpush1.msra.mxu0 %v66
    %373 = vmatprep.subr.mxu0 0.0
    %374 = vmatpush1.msra.mxu0 %v65
    %375 = vmatprep.subr.mxu0 0.0
    %376 = vmatpush1.msra.mxu0 %v64
    %377 = vmatprep.subr.mxu0 0.0
    %378 = vmatpush1.msra.mxu0 %v63
    %379 = vmatprep.subr.mxu0 0.0
    %380 = vmatpush1.msra.mxu0 %v62
    %381 = vmatprep.subr.mxu0 0.0
    %382 = vmatpush1.msra.mxu0 %v61
    %383 = vmatprep.subr.mxu0 0.0
    %384 = vmatpush1.msra.mxu0 %v60
    %385 = vmatprep.subr.mxu0 0.0
    %386 = vmatpush2.msra.mxu0 0.0
    %387 = vmatprep.subr.mxu0 0.0
    %388 = vmatpush2.msra.mxu0 0.0
    %389 = vmatprep.subr.mxu0 0.0
    %390 = vmatpush2.msra.mxu0 0.0
    %391 = vmatprep.subr.mxu0 0.0
    %392 = vmatpush2.msra.mxu0 0.0
    %393 = vmatprep.subr.mxu0 0.0
    %394 = vmatpush2.msra.mxu0 0.0
    %395 = vmatprep.subr.mxu0 0.0
    %396 = vmatpush2.msra.mxu0 0.0
    %397 = vmatprep.subr.mxu0 0.0
    %398 = vmatpush2.msra.mxu0 0.0
    %399 = vmatprep.subr.mxu0 0.0
    %400 = vmatpush2.msra.mxu0 0.0
    %401 = vmatprep.subr.mxu0 0.0
    %402 = vmatpush2.msra.mxu0 0.0
    %403 = vmatprep.subr.mxu0 0.0
    %404 = vmatpush2.msra.mxu0 0.0
    %405 = vmatprep.subr.mxu0 0.0
    %406 = vmatpush2.msra.mxu0 0.0
    %407 = vmatprep.subr.mxu0 0.0
    %408 = vmatpush2.msra.mxu0 0.0
    %409 = vmatprep.subr.mxu0 0.0
    %410 = vmatpush2.msra.mxu0 0.0
    %411 = vmatprep.subr.mxu0 0.0
    %412 = vmatpush2.msra.mxu0 0.0
    %413 = vmatprep.subr.mxu0 0.0
    %414 = vmatpush2.msra.mxu0 0.0
    %415 = vmatprep.subr.mxu0 0.0
    %416 = vmatpush2.msra.mxu0 0.0
    %417 = vmatprep.mubr.f32.mxu0 0.0
    %418 = vmatmul.mubr.f32.gmra.mxu0 %v344
    %v419 = vpop.f32.mrf.mxu0
    %v420 = vadd.f32 %v351, %v419
    %v421 = vpop.f32.mrf.mxu0
    %422 = vmatprep.mubr.f32.mxu0 0.0
    %423 = vmatmul.mubr.f32.gmra.mxu0 %v345
    %v424 = vpop.f32.mrf.mxu0
    %v425 = vadd.f32 %v351, %v424
    %v426 = vpop.f32.mrf.mxu0
    %427 = vdwg.mxu0
    %v428 = vxor.u32 %v420, 2147483648
    %v429 = vxor.u32 %v425, 2147483648
    %v430 = vmul.f32 %v428, 1.442695
    %v431 = vpow.pop %v430
    %v432 = vmul.f32 %v429, 1.442695
    %v433 = vpow.pop %v432
    %v434 = vadd.f32 %v431, 1.0
    %v435 = vadd.f32 %v433, 1.0
    %v436 = vrcp.pop %v434
    %v437 = vmul.f32 1.0, %v436
    %v438 = vrcp.pop %v435
    %v439 = vmul.f32 1.0, %v438
    %440 = vst [vmem:[#allocation7] sm:$0xff] %v437
    %441 = vst [vmem:[#allocation7 + $0x8] sm:$0xff] %v439
    // Predicated region
    $region38: #{_forward_impl.1} parent=1 // pred_check
      _
    $region39: #{_forward_impl.1} parent=1 // pred_check_branch
      %443 = sbr.rel (0) target = $region41
    $region40: #{_forward_impl.1} parent=1 // pred_region
      %s445 = ssub.s32 256, 256
      %446 = vsyncadd [#allocation4], %s445
      %s447 = sshll.u32 [#allocation7], 4
      %s448 = int_to_ptr.vmem [resolvable:$true] %s447
      %453 = dma.vmem_to_hbm [thread:$0]  %s448, 256, %s7, [#allocation4], 128, 128, 8
    $region41: #{_forward_impl.1} parent=1 // pred_fallthru
      _
    // Predicated region
    $region42: #{_forward_impl.1} parent=1 // pred_check
      _
    $region43: #{_forward_impl.1} parent=1 // pred_check_branch
      %455 = sbr.rel (0) target = $region45
    $region44: #{_forward_impl.1} parent=1 // pred_region
      %s457 = ssub.s32 256, 256
      %458 = vsyncadd [#allocation9], %s457
      %s459 = sshll.u32 [#allocation8], 4
      %s460 = int_to_ptr.vmem [resolvable:$true] %s459
      %465 = dma.vmem_to_hbm [thread:$0]  %s460, 256, %s8, [#allocation9], 128, 128, 8
    $region45: #{_forward_impl.1} parent=1 // pred_fallthru
      _
    // Predicated region
    $region46: #{_forward_impl.1} parent=1 // pred_check
      _
    $region47: #{_forward_impl.1} parent=1 // pred_check_branch
      %467 = sbr.rel (0) target = $region49
    $region48: #{_forward_impl.1} parent=1 // pred_region
      %468 = dma.done [#allocation4], 256
    $region49: #{_forward_impl.1} parent=1 // pred_fallthru
      _
    // Predicated region
    $region50: #{_forward_impl.1} parent=1 // pred_check
      _
    $region51: #{_forward_impl.1} parent=1 // pred_check_branch
      %470 = sbr.rel (0) target = $region53
    $region52: #{_forward_impl.1} parent=1 // pred_region
      %471 = dma.done [#allocation9], 256
    $region53: #{_forward_impl.1} parent=1 // pred_fallthru
      _
    %472 = vsyncpa [#allocation3], 1
    %473 = vsyncpa [#allocation6], 1
    %474 = vsyncpa [#allocation4], 1
    %475 = vsyncpa [#allocation9], 1

</llo_original>
